<compile_context>
chip_gen: v6e
topology: v6e:2x2x1
jax: 0.10.0
libtpu: 0.0.40
codegen_flags: <defaults>
</compile_context>

<pallas_src>
import jax
import jax.numpy as jnp
from jax.experimental import pallas as pl
from jax.experimental.pallas import tpu as pltpu


def _round_up(n, m):
    return ((n + m - 1) // m) * m


def _net_kernel(x_ref, w1_ref, b1_ref, w2_ref, b2_ref, w3_ref, b3_ref, o_ref):
    # x: [6, TB] f32   w1: [32, 6] bf16   b1: [32, 1] f32
    # w2: [16, 32] bf16  b2: [16, 1] f32  w3: [16, 1] f32  b3: [1, 1] f32
    # o: [1, TB] f32
    x = x_ref[...].astype(jnp.bfloat16)

    # fc1 + LeakyReLU(0.01)   (dropout1: identity in eval mode)
    h1 = jnp.dot(w1_ref[...], x, preferred_element_type=jnp.float32) + b1_ref[...]
    h1 = jnp.maximum(h1, 0.01 * h1)

    # fc2 + LeakyReLU(0.01)   (dropout2: identity in eval mode)
    h2 = jnp.dot(w2_ref[...], h1.astype(jnp.bfloat16),
                 preferred_element_type=jnp.float32) + b2_ref[...]
    h2 = jnp.maximum(h2, 0.01 * h2)

    # output (16 -> 1): VPU multiply + sublane reduce (skip a 1-row MXU pop).
    logits = jnp.sum(w3_ref[...] * h2, axis=0, keepdims=True) + b3_ref[...]

    # Sigmoid via the EUP: exp + approximate reciprocal (free slot).
    o_ref[...] = pl.reciprocal(1.0 + jnp.exp(-logits), approx=True)


def net_forward_fm(x_fm, params, tb=32768):
    """Forward pass, feature-major input (preferred layout — no transpose pass).

    x_fm: [6, B] float32 (batch on the lane axis).  Returns [1, B] float32.
    """
    F, B = x_fm.shape
    assert F == 6

    # Pad the batch only to a multiple of 128; the last grid block may be partial.
    B_pad = _round_up(max(B, 1), 128)
    # Ensure >=2 grid steps whenever the batch allows (v7x dual-TC via "parallel").
    if B_pad >= 256:
        TB = min(tb, _round_up(-(-B_pad // 2), 128))
    else:
        TB = 128
    grid = (pl.cdiv(B_pad, TB),)

    x_p = jnp.pad(x_fm.astype(jnp.float32), ((0, 0), (0, B_pad - B)))  # [6, B_pad]
    w1 = params["w1"].astype(jnp.bfloat16)                      # [32, 6]
    b1 = params["b1"].reshape(-1, 1).astype(jnp.float32)        # [32, 1]
    w2 = params["w2"].astype(jnp.bfloat16)                      # [16, 32]
    b2 = params["b2"].reshape(-1, 1).astype(jnp.float32)        # [16, 1]
    w3 = params["w3"].reshape(-1, 1).astype(jnp.float32)        # [16, 1]
    b3 = params["b3"].reshape(1, 1).astype(jnp.float32)         # [1, 1]

    const = lambda a: pl.BlockSpec(a.shape, lambda i: (0, 0))   # resident weights

    # Per-lane VMEM footprint (double-buffered x/out I/O + f32/bf16 temps) is
    # ~400 B; keep the scoped limit in [32, 48] MiB — above v5e's 16 MiB default,
    # comfortably below v7x's 64 MiB physical VMEM.
    vmem_limit = int(min(48 << 20, max(32 << 20, TB * 420)))

    n_weight_bytes = 4 * (32 * 6 + 32 + 16 * 32 + 16 + 16 + 1)
    cost = pl.CostEstimate(
        flops=int(B_pad * 1600),
        transcendentals=int(B_pad * 2),
        bytes_accessed=int(B_pad * 7 * 4 + n_weight_bytes),
    )

    out = pl.pallas_call(
        _net_kernel,
        out_shape=jax.ShapeDtypeStruct((1, B_pad), jnp.float32),
        grid=grid,
        in_specs=[
            pl.BlockSpec((6, TB), lambda i: (0, i)),            # x tile (pipelined)
            const(w1), const(b1),
            const(w2), const(b2),
            const(w3), const(b3),
        ],
        out_specs=pl.BlockSpec((1, TB), lambda i: (0, i)),      # lane-dense output
        compiler_params=pltpu.CompilerParams(
            dimension_semantics=("parallel",),
            vmem_limit_bytes=vmem_limit,
        ),
        cost_estimate=cost,
    )(x_p, w1, b1, w2, b2, w3, b3)

    return out[:, :B]                                           # [1, B]


def net_forward(x, params, tb=32768):
    """PyTorch-layout convenience wrapper: x [B, 6] -> [B, 1].

    Prefer producing x feature-major ([6, B]) upstream and calling
    net_forward_fm directly to skip the extra x.T HBM pass.
    """
    return net_forward_fm(x.T, params, tb=tb).T


def init_params(key):
    """Deterministic synthetic parameters matching nn.Linear layouts ([out, in])."""
    def linear(key, fan_in, fan_out):
        kw, kb = jax.random.split(key)
        bound = 1.0 / jnp.sqrt(fan_in)
        w = jax.random.uniform(kw, (fan_out, fan_in), jnp.float32, -bound, bound)
        b = jax.random.uniform(kb, (fan_out,), jnp.float32, -bound, bound)
        return w, b

    k1, k2, k3 = jax.random.split(key, 3)
    w1, b1 = linear(k1, 6, 32)    # fc1: Linear(6, 32)
    w2, b2 = linear(k2, 32, 16)   # fc2: Linear(32, 16)
    w3, b3 = linear(k3, 16, 1)    # output: Linear(16, 1)
    return {"w1": w1, "b1": b1, "w2": w2, "b2": b2, "w3": w3, "b3": b3}


def _ref_f32(x, p):
    """Pure-f32 plain-JAX reference (PyTorch semantics; dropout = identity)."""
    h = x @ p["w1"].T + p["b1"]
    h = jnp.where(h >= 0, h, 0.01 * h)
    h = h @ p["w2"].T + p["b2"]
    h = jnp.where(h >= 0, h, 0.01 * h)
    return jax.nn.sigmoid(h @ p["w3"].T + p["b3"].reshape(1, 1))


def _ref_matched(x, p):
    """Reference matching the kernel's numeric recipe (bf16 MXU operands, f32 acc)."""
    h = jnp.dot(x.astype(jnp.bfloat16), p["w1"].astype(jnp.bfloat16).T,
                preferred_element_type=jnp.float32) + p["b1"]
    h = jnp.maximum(h, 0.01 * h)
    h = jnp.dot(h.astype(jnp.bfloat16), p["w2"].astype(jnp.bfloat16).T,
                preferred_element_type=jnp.float32) + p["b2"]
    h = jnp.maximum(h, 0.01 * h)
    return jax.nn.sigmoid(h @ p["w3"].T + p["b3"].reshape(1, 1))


if __name__ == "__main__":
    key = jax.random.PRNGKey(0)
    kp, kx1, kx2 = jax.random.split(key, 3)
    params = init_params(kp)

    # Small batch: single grid step (B_pad = 128, TB = 128).
    x_small = jax.random.normal(kx1, (8, 6), dtype=jnp.float32)
    out_small = net_forward(x_small, params)
    jax.block_until_ready(out_small)
    assert out_small.shape == (8, 1)
    assert jnp.allclose(out_small, _ref_matched(x_small, params), atol=2e-3)
    assert jnp.allclose(out_small, _ref_f32(x_small, params), atol=2e-2)

    # Ragged batch: 2 grid steps with a masked partial last block (384 = 256 + 128).
    x_multi = jax.random.normal(kx2, (300, 6), dtype=jnp.float32)
    out_multi = net_forward(x_multi, params, tb=256)
    jax.block_until_ready(out_multi)
    assert out_multi.shape == (300, 1)
    assert jnp.allclose(out_multi, _ref_matched(x_multi, params), atol=2e-3)
    assert jnp.allclose(out_multi, _ref_f32(x_multi, params), atol=2e-2)

    # Feature-major entry point (preferred upstream layout, no transpose pass).
    out_fm = net_forward_fm(x_multi.T, params, tb=256)
    jax.block_until_ready(out_fm)
    assert out_fm.shape == (1, 300)
    assert jnp.allclose(out_fm.T, out_multi)

    print("KERNEL_OK")
</pallas_src>

<mosaic_0001>
module attributes {stable_mosaic.version = 11 : i64} {
  func.func @_net_kernel(%arg0: i32, %arg1: memref<6x128xf32, #tpu.memory_space<vmem>>, %arg2: memref<32x6xbf16, #tpu.memory_space<vmem>>, %arg3: memref<32x1xf32, #tpu.memory_space<vmem>>, %arg4: memref<16x32xbf16, #tpu.memory_space<vmem>>, %arg5: memref<16x1xf32, #tpu.memory_space<vmem>>, %arg6: memref<16x1xf32, #tpu.memory_space<vmem>>, %arg7: memref<1x1xf32, #tpu.memory_space<vmem>>, %arg8: memref<1x128xf32, #tpu.memory_space<vmem>>) attributes {dimension_semantics = [#tpu.dimension_semantics<parallel>], iteration_bounds = array<i64: 1>, scalar_prefetch = 0 : i64, scratch_operands = 0 : i64, tpu.core_type = #tpu.core_type<tc>, window_params = [{transform_indices = @transform_0, window_bounds = array<i64: 6, 128>}, {pipeline_mode = #tpu.pipeline_mode<synchronous>, transform_indices = @transform_1, window_bounds = array<i64: 32, 6>}, {pipeline_mode = #tpu.pipeline_mode<synchronous>, transform_indices = @transform_2, window_bounds = array<i64: 32, 1>}, {pipeline_mode = #tpu.pipeline_mode<synchronous>, transform_indices = @transform_3, window_bounds = array<i64: 16, 32>}, {pipeline_mode = #tpu.pipeline_mode<synchronous>, transform_indices = @transform_4, window_bounds = array<i64: 16, 1>}, {pipeline_mode = #tpu.pipeline_mode<synchronous>, transform_indices = @transform_5, window_bounds = array<i64: 16, 1>}, {pipeline_mode = #tpu.pipeline_mode<synchronous>, transform_indices = @transform_6, window_bounds = array<i64: 1, 1>}, {transform_indices = @transform_7, window_bounds = array<i64: 1, 128>}]} {
    %c0 = arith.constant 0 : index
    %c0_0 = arith.constant 0 : index
    %0 = vector.load %arg1[%c0, %c0_0] : memref<6x128xf32, #tpu.memory_space<vmem>>, vector<6x128xf32>
    %1 = arith.truncf %0 : vector<6x128xf32> to vector<6x128xbf16>
    %c0_1 = arith.constant 0 : index
    %c0_2 = arith.constant 0 : index
    %2 = vector.load %arg2[%c0_1, %c0_2] : memref<32x6xbf16, #tpu.memory_space<vmem>>, vector<32x6xbf16>
    %cst = arith.constant dense<0.000000e+00> : vector<32x128xf32>
    %3 = tpu.matmul %2, %1, %cst {dimension_numbers = #tpu.dot_dimension_numbers<[1], [0], [0], [1], [0, 0, 1, 1], [], []>} : vector<32x6xbf16>, vector<6x128xbf16>, vector<32x128xf32> -> vector<32x128xf32>
    %c0_3 = arith.constant 0 : index
    %c0_4 = arith.constant 0 : index
    %4 = vector.load %arg3[%c0_3, %c0_4] : memref<32x1xf32, #tpu.memory_space<vmem>>, vector<32x1xf32>
    %5 = vector.broadcast %4 : vector<32x1xf32> to vector<32x128xf32>
    %6 = arith.addf %3, %5 : vector<32x128xf32>
    %cst_5 = arith.constant 0.00999999977 : f32
    %7 = vector.broadcast %cst_5 : f32 to vector<32x128xf32>
    %8 = arith.mulf %7, %6 : vector<32x128xf32>
    %9 = arith.maximumf %6, %8 : vector<32x128xf32>
    %c0_6 = arith.constant 0 : index
    %c0_7 = arith.constant 0 : index
    %10 = vector.load %arg4[%c0_6, %c0_7] : memref<16x32xbf16, #tpu.memory_space<vmem>>, vector<16x32xbf16>
    %11 = arith.truncf %9 : vector<32x128xf32> to vector<32x128xbf16>
    %cst_8 = arith.constant dense<0.000000e+00> : vector<16x128xf32>
    %12 = tpu.matmul %10, %11, %cst_8 {dimension_numbers = #tpu.dot_dimension_numbers<[1], [0], [0], [1], [0, 0, 1, 1], [], []>} : vector<16x32xbf16>, vector<32x128xbf16>, vector<16x128xf32> -> vector<16x128xf32>
    %c0_9 = arith.constant 0 : index
    %c0_10 = arith.constant 0 : index
    %13 = vector.load %arg5[%c0_9, %c0_10] : memref<16x1xf32, #tpu.memory_space<vmem>>, vector<16x1xf32>
    %14 = vector.broadcast %13 : vector<16x1xf32> to vector<16x128xf32>
    %15 = arith.addf %12, %14 : vector<16x128xf32>
    %cst_11 = arith.constant 0.00999999977 : f32
    %16 = vector.broadcast %cst_11 : f32 to vector<16x128xf32>
    %17 = arith.mulf %16, %15 : vector<16x128xf32>
    %18 = arith.maximumf %15, %17 : vector<16x128xf32>
    %c0_12 = arith.constant 0 : index
    %c0_13 = arith.constant 0 : index
    %19 = vector.load %arg6[%c0_12, %c0_13] : memref<16x1xf32, #tpu.memory_space<vmem>>, vector<16x1xf32>
    %20 = vector.broadcast %19 : vector<16x1xf32> to vector<16x128xf32>
    %21 = arith.mulf %20, %18 : vector<16x128xf32>
    %cst_14 = arith.constant dense<0.000000e+00> : vector<128xf32>
    %22 = vector.multi_reduction <add>, %21, %cst_14 [0] : vector<16x128xf32> to vector<128xf32>
    %23 = vector.shape_cast %22 : vector<128xf32> to vector<1x128xf32>
    %c0_15 = arith.constant 0 : index
    %c0_16 = arith.constant 0 : index
    %24 = vector.load %arg7[%c0_15, %c0_16] : memref<1x1xf32, #tpu.memory_space<vmem>>, vector<1x1xf32>
    %25 = vector.broadcast %24 : vector<1x1xf32> to vector<1x128xf32>
    %26 = arith.addf %23, %25 : vector<1x128xf32>
    %cst_17 = arith.constant 0.000000e+00 : f32
    %27 = vector.broadcast %cst_17 : f32 to vector<1x128xf32>
    %28 = arith.subf %27, %26 : vector<1x128xf32>
    %29 = math.exp %28 : vector<1x128xf32>
    %cst_18 = arith.constant 1.000000e+00 : f32
    %30 = vector.broadcast %cst_18 : f32 to vector<1x128xf32>
    %31 = arith.addf %30, %29 : vector<1x128xf32>
    %32 = tpu.reciprocal %31 {approx = true} : vector<1x128xf32> -> vector<1x128xf32>
    %c0_19 = arith.constant 0 : index
    %c0_20 = arith.constant 0 : index
    %33 = vector.load %arg8[%c0_19, %c0_20] : memref<1x128xf32, #tpu.memory_space<vmem>>, vector<1x128xf32>
    tpu.vector_store %arg8[%c0_19, %c0_20], %32 {strides = array<i32>} : memref<1x128xf32, #tpu.memory_space<vmem>>, vector<1x128xf32>,
    return
  }
  func.func @transform_0(%arg0: i32) -> (i32, i32) {
    %c0_i32 = arith.constant 0 : i32
    %c0_i32_0 = arith.constant 0 : i32
    return %c0_i32, %arg0 : i32, i32
  }
  func.func @transform_1(%arg0: i32) -> (i32, i32) {
    %c0_i32 = arith.constant 0 : i32
    %c0_i32_0 = arith.constant 0 : i32
    %c0_i32_1 = arith.constant 0 : i32
    return %c0_i32, %c0_i32_0 : i32, i32
  }
  func.func @transform_2(%arg0: i32) -> (i32, i32) {
    %c0_i32 = arith.constant 0 : i32
    %c0_i32_0 = arith.constant 0 : i32
    %c0_i32_1 = arith.constant 0 : i32
    return %c0_i32, %c0_i32_0 : i32, i32
  }
  func.func @transform_3(%arg0: i32) -> (i32, i32) {
    %c0_i32 = arith.constant 0 : i32
    %c0_i32_0 = arith.constant 0 : i32
    %c0_i32_1 = arith.constant 0 : i32
    return %c0_i32, %c0_i32_0 : i32, i32
  }
  func.func @transform_4(%arg0: i32) -> (i32, i32) {
    %c0_i32 = arith.constant 0 : i32
    %c0_i32_0 = arith.constant 0 : i32
    %c0_i32_1 = arith.constant 0 : i32
    return %c0_i32, %c0_i32_0 : i32, i32
  }
  func.func @transform_5(%arg0: i32) -> (i32, i32) {
    %c0_i32 = arith.constant 0 : i32
    %c0_i32_0 = arith.constant 0 : i32
    %c0_i32_1 = arith.constant 0 : i32
    return %c0_i32, %c0_i32_0 : i32, i32
  }
  func.func @transform_6(%arg0: i32) -> (i32, i32) {
    %c0_i32 = arith.constant 0 : i32
    %c0_i32_0 = arith.constant 0 : i32
    %c0_i32_1 = arith.constant 0 : i32
    return %c0_i32, %c0_i32_0 : i32, i32
  }
  func.func @transform_7(%arg0: i32) -> (i32, i32) {
    %c0_i32 = arith.constant 0 : i32
    %c0_i32_0 = arith.constant 0 : i32
    return %c0_i32, %arg0 : i32, i32
  }
}

</mosaic_0001>

<llo_original>
// kernel: tpu_custom_call.1
$region0: #{tpu_custom_call.1}
  #allocation0 [shape = 'u32[]', space=smem, size = 0x4, offset = 0x4, fixed_abs, tag = 'smem constant byte address 0x4 - core index']
  #allocation1 [shape = 'u32[144,128]{1,0:T(1,128)}', space=vmem, size = 0x12000, scoped, tag = 'internal scratch']
  #allocation2 [shape = 'f32[1,1]{1,0:T(1,128)S(1)}', space=vmem, size = 0x200, scoped, tag = 'scoped memory for tpu_custom_call.1']
  %s0 = inlined_call_operand.vmem [shape: f32[6,128], index: 0, kind: input, shape index: {}]
  %s1 = inlined_call_operand.vmem [shape: bf16[32,6], index: 1, kind: input, shape index: {}]
  %s2 = inlined_call_operand.vmem [shape: f32[32,1], index: 2, kind: input, shape index: {}]
  %s3 = inlined_call_operand.vmem [shape: bf16[16,32], index: 3, kind: input, shape index: {}]
  %s4 = inlined_call_operand.vmem [shape: f32[16,1], index: 4, kind: input, shape index: {}]
  %s5 = inlined_call_operand.vmem [shape: f32[16,1], index: 5, kind: input, shape index: {}]
  %s6 = inlined_call_operand.<no memory space> [shape: f32[1,1], index: 6, kind: input, shape index: {}]
  %s7 = inlined_call_operand.hbm [shape: f32[1,128], index: 7, kind: output, shape index: {}]
  %s8 = sld [smem:[#allocation0]]
  $region38: #{tpu_custom_call.1} parent=0
    _
  %s10 = ssub.s32 1, %s8
  %s11 = scalar_select 0, %s10, %s8
  %v12 = vstv %s6
  %13 = vst [vmem:[#allocation2] sm:$0x1] %v12
  $region1: #{tpu_custom_call.1} parent=0
    #allocation3 [shape = 'u8[512]{0}', space=vmem, size = 0x400, scoped, tag = 'output window, operand 0, single buffered']
    #allocation4 [shape = 's32[1]{0}', space=sflag, size = 0x4, scoped, tag = 'scoped memory for tpu_custom_call.1']
    %14 = vsyncpa [#allocation4], 0
    // Predicated region
    $region2: #{tpu_custom_call.1} parent=1 // pred_check
      _
    $region3: #{tpu_custom_call.1} parent=1 // pred_check_branch
      %16 = sbr.rel (0) target = $region5
    $region4: #{tpu_custom_call.1} parent=1 // pred_region
      _
    $region5: #{tpu_custom_call.1} parent=1 // pred_fallthru
      _
    // Predicated region
    $region6: #{tpu_custom_call.1} parent=1 // pred_check
      _
    $region7: #{tpu_custom_call.1} parent=1 // pred_check_branch
      %18 = sbr.rel (0) target = $region9
    $region8: #{tpu_custom_call.1} parent=1 // pred_region
      _
    $region9: #{tpu_custom_call.1} parent=1 // pred_fallthru
      _
    // Predicated region
    $region10: #{tpu_custom_call.1} parent=1 // pred_check
      _
    $region11: #{tpu_custom_call.1} parent=1 // pred_check_branch
      %20 = sbr.rel (0) target = $region13
    $region12: #{tpu_custom_call.1} parent=1 // pred_region
      _
    $region13: #{tpu_custom_call.1} parent=1 // pred_fallthru
      _
    // Predicated region
    $region14: #{tpu_custom_call.1} parent=1 // pred_check
      _
    $region15: #{tpu_custom_call.1} parent=1 // pred_check_branch
      %22 = sbr.rel (0) target = $region17
    $region16: #{tpu_custom_call.1} parent=1 // pred_region
      _
    $region17: #{tpu_custom_call.1} parent=1 // pred_fallthru
      _
    // Predicated region
    $region18: #{tpu_custom_call.1} parent=1 // pred_check
      _
    $region19: #{tpu_custom_call.1} parent=1 // pred_check_branch
      %24 = sbr.rel (0) target = $region21
    $region20: #{tpu_custom_call.1} parent=1 // pred_region
      _
    $region21: #{tpu_custom_call.1} parent=1 // pred_fallthru
      _
    // Predicated region
    $region22: #{tpu_custom_call.1} parent=1 // pred_check
      _
    $region23: #{tpu_custom_call.1} parent=1 // pred_check_branch
      %26 = sbr.rel (0) target = $region25
    $region24: #{tpu_custom_call.1} parent=1 // pred_region
      _
    $region25: #{tpu_custom_call.1} parent=1 // pred_fallthru
      _
    // Predicated region
    $region26: #{tpu_custom_call.1} parent=1 // pred_check
      _
    $region27: #{tpu_custom_call.1} parent=1 // pred_check_branch
      %28 = sbr.rel (0) target = $region29
    $region28: #{tpu_custom_call.1} parent=1 // pred_region
      _
    $region29: #{tpu_custom_call.1} parent=1 // pred_fallthru
      _
    %v30 = vld [vmem:[%s0] sm:$0x3f]
    %v31 = vpack.c.bf16 %v30, %v30
    %v32 = vld [vmem:[%s1] sm:$0xf]
    %v33 = vld [vmem:[%s1 + $0x4] sm:$0xf]
    %v34 = vld [vmem:[%s1 + $0x8] sm:$0xf]
    %v35 = vld [vmem:[%s1 + $0xc] sm:$0xf]
    %v36 = vld [vmem:[%s2] sm:$0xff]
    %v37 = vld [vmem:[%s2 + $0x8] sm:$0xff]
    %v38 = vld [vmem:[%s2 + $0x10] sm:$0xff]
    %v39 = vld [vmem:[%s2 + $0x18] sm:$0xff]
    %41 = vset.pattern.permute.xlu0 0
    %42 = vperm.xlu0 %41, %v36
    %v43 = vpop.permute.xlu0 %42
    %46 = vset.pattern.permute.xlu0 0
    %47 = vperm.xlu0 %46, %v37
    %v48 = vpop.permute.xlu0 %47
    %51 = vset.pattern.permute.xlu0 0
    %52 = vperm.xlu0 %51, %v38
    %v53 = vpop.permute.xlu0 %52
    %56 = vset.pattern.permute.xlu0 0
    %57 = vperm.xlu0 %56, %v39
    %v58 = vpop.permute.xlu0 %57
    %v64 = vunpack.c.l.b16 %v32
    %v65 = vunpack.c.l.b16 %v33
    %v66 = vunpack.c.l.b16 %v34
    %v67 = vunpack.c.l.b16 %v35
    %v68 = vpack.c.b16 %v65, %v64
    %v69 = vpack.c.b16 %v67, %v66
    %vm70 = vcmask 48128
    %v72 = vsel %vm70, %v68, 0
    %v75 = vsel %vm70, %v69, 0
    %vm77 = vcmask 1042432
    %v79 = vsel %vm77, %v31, 0
    %81 = vmatprep.subr.bf16.mxu0 0
    %82 = vmatpush1.bf16.msra.mxu0 0
    %83 = vmatprep.subr.bf16.mxu0 0
    %84 = vmatpush1.bf16.msra.mxu0 0
    %85 = vmatprep.subr.bf16.mxu0 0
    %86 = vmatpush1.bf16.msra.mxu0 0
    %87 = vmatprep.subr.bf16.mxu0 0
    %88 = vmatpush1.bf16.msra.mxu0 0
    %89 = vmatprep.subr.bf16.mxu0 0
    %90 = vmatpush1.bf16.msra.mxu0 0
    %91 = vmatprep.subr.bf16.mxu0 0
    %92 = vmatpush1.bf16.msra.mxu0 0
    %93 = vmatprep.subr.bf16.mxu0 0
    %94 = vmatpush1.bf16.msra.mxu0 0
    %95 = vmatprep.subr.bf16.mxu0 0
    %96 = vmatpush1.bf16.msra.mxu0 %v79
    %97 = vmatprep.subr.bf16.mxu0 0
    %98 = vmatpush2.bf16.msra.mxu0 0
    %99 = vmatprep.subr.bf16.mxu0 0
    %100 = vmatpush2.bf16.msra.mxu0 0
    %101 = vmatprep.subr.bf16.mxu0 0
    %102 = vmatpush2.bf16.msra.mxu0 0
    %103 = vmatprep.subr.bf16.mxu0 0
    %104 = vmatpush2.bf16.msra.mxu0 0
    %105 = vmatprep.subr.bf16.mxu0 0
    %106 = vmatpush2.bf16.msra.mxu0 0
    %107 = vmatprep.subr.bf16.mxu0 0
    %108 = vmatpush2.bf16.msra.mxu0 0
    %109 = vmatprep.subr.bf16.mxu0 0
    %110 = vmatpush2.bf16.msra.mxu0 0
    %111 = vmatprep.subr.bf16.mxu0 0
    %112 = vmatpush2.bf16.msra.mxu0 0
    %113 = vmatprep.mubr.bf16.mxu0 0
    %114 = vmatmul.mubr.bf16.gmra.mxu0 %v72
    %v115 = vpop.f32.mrf.mxu0
    %v116 = vadd.f32 %v43, %v115
    %v117 = vpop.f32.mrf.mxu0
    %v118 = vpop.f32.mrf.mxu0
    %v119 = vadd.f32 %v48, %v118
    %v120 = vpop.f32.mrf.mxu0
    %121 = vmatprep.mubr.bf16.mxu0 0
    %122 = vmatmul.mubr.bf16.gmra.mxu0 %v75
    %v123 = vpop.f32.mrf.mxu0
    %v124 = vadd.f32 %v53, %v123
    %v125 = vpop.f32.mrf.mxu0
    %v126 = vpop.f32.mrf.mxu0
    %v127 = vadd.f32 %v58, %v126
    %v128 = vpop.f32.mrf.mxu0
    %129 = vdwg.mxu0
    %v130 = vmul.f32 %v116, 0.01
    %v131 = vmul.f32 %v119, 0.01
    %v132 = vmul.f32 %v124, 0.01
    %v133 = vmul.f32 %v127, 0.01
    %v134 = vmax.f32 %v116, %v130
    %v135 = vmax.f32 %v119, %v131
    %v136 = vmax.f32 %v124, %v132
    %v137 = vmax.f32 %v127, %v133
    %v138 = vld [vmem:[%s3] sm:$0xf]
    %v139 = vld [vmem:[%s3 + $0x4] sm:$0xf]
    %v140 = vpack.c.bf16 %v135, %v134
    %v141 = vpack.c.bf16 %v137, %v136
    %v142 = vld [vmem:[%s4] sm:$0xff]
    %v143 = vld [vmem:[%s4 + $0x8] sm:$0xff]
    %145 = vset.pattern.permute.xlu0 0
    %146 = vperm.xlu0 %145, %v142
    %v147 = vpop.permute.xlu0 %146
    %150 = vset.pattern.permute.xlu0 0
    %151 = vperm.xlu0 %150, %v143
    %v152 = vpop.permute.xlu0 %151
    %v156 = vunpack.c.l.b16 %v138
    %v157 = vunpack.c.l.b16 %v139
    %v158 = vpack.c.b16 %v157, %v156
    %vm159 = vcmask 261120
    %v161 = vsel %vm159, %v158, 0
    %163 = vmatprep.subr.bf16.mxu0 0
    %164 = vmatpush1.bf16.msra.mxu0 0
    %165 = vmatprep.subr.bf16.mxu0 0
    %166 = vmatpush1.bf16.msra.mxu0 0
    %167 = vmatprep.subr.bf16.mxu0 0
    %168 = vmatpush1.bf16.msra.mxu0 0
    %169 = vmatprep.subr.bf16.mxu0 0
    %170 = vmatpush1.bf16.msra.mxu0 0
    %171 = vmatprep.subr.bf16.mxu0 0
    %172 = vmatpush1.bf16.msra.mxu0 0
    %173 = vmatprep.subr.bf16.mxu0 0
    %174 = vmatpush1.bf16.msra.mxu0 0
    %175 = vmatprep.subr.bf16.mxu0 0
    %176 = vmatpush1.bf16.msra.mxu0 %v141
    %177 = vmatprep.subr.bf16.mxu0 0
    %178 = vmatpush1.bf16.msra.mxu0 %v140
    %179 = vmatprep.subr.bf16.mxu0 0
    %180 = vmatpush2.bf16.msra.mxu0 0
    %181 = vmatprep.subr.bf16.mxu0 0
    %182 = vmatpush2.bf16.msra.mxu0 0
    %183 = vmatprep.subr.bf16.mxu0 0
    %184 = vmatpush2.bf16.msra.mxu0 0
    %185 = vmatprep.subr.bf16.mxu0 0
    %186 = vmatpush2.bf16.msra.mxu0 0
    %187 = vmatprep.subr.bf16.mxu0 0
    %188 = vmatpush2.bf16.msra.mxu0 0
    %189 = vmatprep.subr.bf16.mxu0 0
    %190 = vmatpush2.bf16.msra.mxu0 0
    %191 = vmatprep.subr.bf16.mxu0 0
    %192 = vmatpush2.bf16.msra.mxu0 0
    %193 = vmatprep.subr.bf16.mxu0 0
    %194 = vmatpush2.bf16.msra.mxu0 0
    %195 = vmatprep.mubr.bf16.mxu0 0
    %196 = vmatmul.mubr.bf16.gmra.mxu0 %v161
    %v197 = vpop.f32.mrf.mxu0
    %v198 = vadd.f32 %v147, %v197
    %v199 = vpop.f32.mrf.mxu0
    %v200 = vpop.f32.mrf.mxu0
    %v201 = vadd.f32 %v152, %v200
    %v202 = vpop.f32.mrf.mxu0
    %203 = vdwg.mxu0
    %v204 = vmul.f32 %v198, 0.01
    %v205 = vmul.f32 %v201, 0.01
    %v206 = vmax.f32 %v198, %v204
    %v207 = vmax.f32 %v201, %v205
    %v208 = vld [vmem:[%s5] sm:$0xff]
    %v209 = vld [vmem:[%s5 + $0x8] sm:$0xff]
    %211 = vset.pattern.permute.xlu0 0
    %212 = vperm.xlu0 %211, %v208
    %v213 = vpop.permute.xlu0 %212
    %216 = vset.pattern.permute.xlu0 0
    %217 = vperm.xlu0 %216, %v209
    %v218 = vpop.permute.xlu0 %217
    %v220 = vmul.f32 %v213, %v206
    %v221 = vmul.f32 %v218, %v207
    %v222 = vadd.f32 %v220, %v221
    %v223 = vrot.slane %v222, 4
    %v224 = vadd.f32 %v222, %v223
    %v225 = vrot.slane %v224, 2
    %v226 = vadd.f32 %v224, %v225
    %v227 = vrot.slane %v226, 1
    %v228 = vadd.f32 %v226, %v227
    %v229 = vld [vmem:[#allocation2] sm:$0x1]
    %231 = vset.pattern.permute.xlu0 0
    %232 = vperm.xlu0 %231, %v229
    %v233 = vpop.permute.xlu0 %232
    %v235 = vlaneseq
    %v236 = vshrl.u32 %v235, 7
    %v237 = vsub.s32 0, %v236
    %v238 = vrot.slane %v233, %v237
    %v239 = vadd.f32 %v228, %v238
    %v240 = vsub.f32 0.0, %v239
    %v241 = vmul.f32 %v240, 1.442695
    %v242 = vpow.pop %v241
    %v243 = vadd.f32 %v242, 1.0
    %v244 = vrcp.pop %v243
    %245 = vst [vmem:[#allocation3] sm:$0x1] %v244
    // Predicated region
    $region30: #{tpu_custom_call.1} parent=1 // pred_check
      _
    $region31: #{tpu_custom_call.1} parent=1 // pred_check_branch
      %247 = sbr.rel (0) target = $region33
    $region32: #{tpu_custom_call.1} parent=1 // pred_region
      %s249 = ssub.s32 16, 16
      %250 = vsyncadd [#allocation4], %s249
      %s252 = sshll.u32 [#allocation3], 4
      %s253 = int_to_ptr.vmem [resolvable:$true] %s252
      %255 = dma.vmem_to_hbm [thread:$0]  %s253, 16, %s7, [#allocation4]
    $region33: #{tpu_custom_call.1} parent=1 // pred_fallthru
      _
    // Predicated region
    $region34: #{tpu_custom_call.1} parent=1 // pred_check
      _
    $region35: #{tpu_custom_call.1} parent=1 // pred_check_branch
      %257 = sbr.rel (0) target = $region37
    $region36: #{tpu_custom_call.1} parent=1 // pred_region
      %258 = dma.done [#allocation4], 16
    $region37: #{tpu_custom_call.1} parent=1 // pred_fallthru
      _
    %259 = vsyncpa [#allocation4], 1

</llo_original>
